<compile_context>
chip_gen: v7x
topology: tpu7x:2x2x1
jax: 0.10.0
libtpu: 0.0.40
codegen_flags: <defaults>
</compile_context>

<pallas_src>
import numpy as np
import jax
import jax.numpy as jnp
from jax.experimental import pallas as pl
from jax.experimental.pallas import tpu as pltpu


# ---------------------------------------------------------------- PE buffer --
def build_positional_embeddings(d_model: int, sequence_length: int) -> np.ndarray:
    """Vectorized reproduction of the reference buffer construction, including
    its operator-precedence quirk: odd columns use 1000**(i - 1/d_model),
    NOT 1000**((i-1)/d_model)."""
    i = np.arange(d_model, dtype=np.float64)[None, :]            # (1, D)
    j = np.arange(sequence_length, dtype=np.float64)[:, None]    # (S, 1)
    even = (i % 2 == 0)
    with np.errstate(over="ignore"):
        omega = np.where(
            even,
            np.power(1000.0, i / d_model),            # even: 1000**(i/d)
            np.power(1000.0, i - 1.0 / d_model),      # odd : reference quirk
        )
    arg = j / omega            # j/inf -> 0 for huge odd exponents (cos -> 1.0)
    return np.where(even, np.sin(arg), np.cos(arg))              # (S, D) f64


# ------------------------------------------------------------------- kernel --
def _add_pe_kernel(x_ref, pe_ref, o_ref):
    # (bt, rt, ct) + (rt, ct) broadcast add: pure VPU, HBM-bandwidth bound.
    o_ref[...] = x_ref[...] + pe_ref[...][None, :, :]


# ------------------------------------------------------------------ helpers --
_BLOCK_BUDGET_BYTES = 2 << 20   # ~2 MiB per x/out block; double-buffered total
                                # (x + out + pe) stays <= ~12 MiB on all gens.


def _pad_up(v: int, q: int) -> int:
    return ((v + q - 1) // q) * q


def _divisors(m: int):
    out = set()
    d = 1
    while d * d <= m:
        if m % d == 0:
            out.add(d)
            out.add(m // d)
        d += 1
    return out


def _choose_layout(S: int, D: int):
    """View the (S, D) positional slab as (R, C) with C lane-friendly."""
    if D % 128 == 0:
        return S, D                      # already lane-dense
    n = S * D
    if n % 128 != 0:
        return S, D                      # cannot fold; masked-lane fallback
    best_key, best_rc = None, None
    for d in _divisors(n // 128):
        C = 128 * d
        R = n // C
        # Reward lane width (up to 1024) and sublane fill (up to 8 rows).
        key = (min(C, 1024) * min(R, 8), min(R, 8), C)
        if best_key is None or key > best_key:
            best_key, best_rc = key, (R, C)
    return best_rc


def _choose_tiles(B: int, R: int, C: int, itemsize: int):
    q = max(8, 32 // itemsize)           # sublane quantum: f32 8, bf16 16, i8 32
    # Lane tile: full extent when small (always legal), else a 128-multiple
    # with a masked ragged tail via pl.cdiv.
    ct = C if C <= 4096 else 4096
    ct_pad = _pad_up(ct, 128)
    # Sublane tile: multiple of q (ragged tail masked) bounded by the budget.
    rows_fit = max(1, _BLOCK_BUDGET_BYTES // (ct_pad * itemsize))
    if R <= q:
        rt = R                           # full extent is always legal
    else:
        rt = max(q, min((R // q) * q, (rows_fit // q) * q))
    rt_pad = _pad_up(rt, q)
    # Batch tile: bounded so a block never exceeds the budget regardless of B.
    slice_bytes = rt_pad * ct_pad * itemsize
    bt = max(1, min(B, _BLOCK_BUDGET_BYTES // slice_bytes))
    # Padding-aware double-buffered footprint: x + out (x-sized) + pe.
    x_blk = bt * slice_bytes
    pe_blk = slice_bytes
    vmem_need = 2 * (2 * x_blk + pe_blk)
    return bt, rt, ct, vmem_need


# ------------------------------------------------------------------ forward --
def _positional_encoding_forward_impl(sequence: jax.Array, pos_emb: jax.Array):
    """sequence: (B, S, D) or (S, D); pos_emb: (S_full, D) or (1, S_full, D)."""
    if sequence.ndim == 2:
        sequence = sequence[None, ...]
    if pos_emb.ndim == 3:
        pos_emb = pos_emb[0]
    B, S, D = sequence.shape
    assert D == pos_emb.shape[1], (
        f"The embedding dimensions of model and input dont match "
        f"model's dimensions : {pos_emb.shape[1]} , input dimensions : {D}"
    )
    assert S <= pos_emb.shape[0], "sequence longer than positional buffer"

    dtype = sequence.dtype
    itemsize = jnp.dtype(dtype).itemsize
    # Cheap under jit (astype is a no-op when pos_emb is pre-built in `dtype`;
    # slice/reshape along leading dims fuse / become layout bitcasts).
    pe = pos_emb[:S, :].astype(dtype)

    R, C = _choose_layout(S, D)
    bt, rt, ct, vmem_need = _choose_tiles(B, R, C, itemsize)

    x3 = sequence.reshape(B, R, C)
    pe2 = pe.reshape(R, C)

    grid = (pl.cdiv(R, rt), pl.cdiv(C, ct), pl.cdiv(B, bt))  # batch innermost:
    # the PE block index is constant over the inner loop -> its DMA is reused.

    cp_kwargs = dict(dimension_semantics=("parallel", "parallel", "parallel"))
    if vmem_need > (12 << 20):
        cp_kwargs["vmem_limit_bytes"] = int(min(vmem_need + (4 << 20), 48 << 20))

    cost = pl.CostEstimate(
        flops=B * S * D,
        transcendentals=0,
        bytes_accessed=(2 * B * S * D + S * D) * itemsize,
    )

    out = pl.pallas_call(
        _add_pe_kernel,
        out_shape=jax.ShapeDtypeStruct((B, R, C), dtype),
        grid_spec=pl.GridSpec(
            grid=grid,
            in_specs=[
                pl.BlockSpec((bt, rt, ct), lambda r, c, b: (b, r, c)),
                pl.BlockSpec((rt, ct), lambda r, c, b: (r, c)),
            ],
            out_specs=pl.BlockSpec((bt, rt, ct), lambda r, c, b: (b, r, c)),
        ),
        compiler_params=pltpu.CompilerParams(**cp_kwargs),
        cost_estimate=cost,
    )(x3, pe2)

    # Inference-mode dropout == identity.
    return out.reshape(B, S, D)


positional_encoding_forward = jax.jit(_positional_encoding_forward_impl)


if __name__ == "__main__":
    # Primary (lane-dense fold) path: S*D = 256 is a multiple of 128.
    d_model = 32
    sequence_length = 8
    batch = 2

    pos_emb = jnp.asarray(
        build_positional_embeddings(d_model, sequence_length), dtype=jnp.float32
    )

    key = jax.random.PRNGKey(0)
    k0, k1 = jax.random.split(key)
    x = jax.random.normal(k0, (batch, sequence_length, d_model), dtype=jnp.float32)

    y = jax.block_until_ready(positional_encoding_forward(x, pos_emb))
    y_ref = x + pos_emb[None, :sequence_length, :]
    np.testing.assert_allclose(np.asarray(y), np.asarray(y_ref), rtol=1e-6, atol=1e-6)

    # Masked-lane fallback path: S*D = 192 is NOT a multiple of 128.
    d2, s2 = 24, 8
    pos_emb2 = jnp.asarray(build_positional_embeddings(d2, s2), dtype=jnp.float32)
    x2 = jax.random.normal(k1, (batch, s2, d2), dtype=jnp.float32)
    y2 = jax.block_until_ready(positional_encoding_forward(x2, pos_emb2))
    np.testing.assert_allclose(
        np.asarray(y2), np.asarray(x2 + pos_emb2[None]), rtol=1e-6, atol=1e-6
    )

    print("KERNEL_OK")
</pallas_src>

<mosaic_0001>
module attributes {stable_mosaic.version = 11 : i64} {
  func.func @_add_pe_kernel(%arg0: i32, %arg1: i32, %arg2: i32, %arg3: memref<2x2x128xf32, #tpu.memory_space<vmem>>, %arg4: memref<2x128xf32, #tpu.memory_space<vmem>>, %arg5: memref<2x2x128xf32, #tpu.memory_space<vmem>>) attributes {dimension_semantics = [#tpu.dimension_semantics<parallel>, #tpu.dimension_semantics<parallel>, #tpu.dimension_semantics<parallel>], iteration_bounds = array<i64: 1, 1, 1>, scalar_prefetch = 0 : i64, scratch_operands = 0 : i64, tpu.core_type = #tpu.core_type<tc>, window_params = [{transform_indices = @transform_0, window_bounds = array<i64: 2, 2, 128>}, {transform_indices = @transform_1, window_bounds = array<i64: 2, 128>}, {transform_indices = @transform_2, window_bounds = array<i64: 2, 2, 128>}]} {
    %c0 = arith.constant 0 : index
    %c0_0 = arith.constant 0 : index
    %c0_1 = arith.constant 0 : index
    %0 = vector.load %arg3[%c0, %c0_0, %c0_1] : memref<2x2x128xf32, #tpu.memory_space<vmem>>, vector<2x2x128xf32>
    %c0_2 = arith.constant 0 : index
    %c0_3 = arith.constant 0 : index
    %1 = vector.load %arg4[%c0_2, %c0_3] : memref<2x128xf32, #tpu.memory_space<vmem>>, vector<2x128xf32>
    %2 = vector.shape_cast %1 : vector<2x128xf32> to vector<1x2x128xf32>
    %3 = vector.broadcast %2 : vector<1x2x128xf32> to vector<2x2x128xf32>
    %4 = arith.addf %0, %3 : vector<2x2x128xf32>
    %c0_4 = arith.constant 0 : index
    %c0_5 = arith.constant 0 : index
    %c0_6 = arith.constant 0 : index
    %5 = vector.load %arg5[%c0_4, %c0_5, %c0_6] : memref<2x2x128xf32, #tpu.memory_space<vmem>>, vector<2x2x128xf32>
    tpu.vector_store %arg5[%c0_4, %c0_5, %c0_6], %4 {strides = array<i32>} : memref<2x2x128xf32, #tpu.memory_space<vmem>>, vector<2x2x128xf32>,
    return
  }
  func.func @transform_0(%arg0: i32, %arg1: i32, %arg2: i32) -> (i32, i32, i32) {
    %c0_i32 = arith.constant 0 : i32
    return %arg2, %arg0, %arg1 : i32, i32, i32
  }
  func.func @transform_1(%arg0: i32, %arg1: i32, %arg2: i32) -> (i32, i32) {
    %c0_i32 = arith.constant 0 : i32
    return %arg0, %arg1 : i32, i32
  }
  func.func @transform_2(%arg0: i32, %arg1: i32, %arg2: i32) -> (i32, i32, i32) {
    %c0_i32 = arith.constant 0 : i32
    return %arg2, %arg0, %arg1 : i32, i32, i32
  }
}

</mosaic_0001>

<llo_original>
// kernel: _positional_encoding_forward_impl.1
$region0: #{_positional_encoding_forward_impl.1}
  #allocation0 [shape = 'u32[]', space=smem, size = 0x4, offset = 0x4, fixed_abs, tag = 'smem constant byte address 0x4 - core index']
  #allocation1 [shape = 'u32[144,128]{1,0:T(1,128)}', space=vmem, size = 0x12000, scoped, tag = 'internal scratch']
  %s0 = inlined_call_operand.vmem [shape: f32[2,2,128], index: 0, kind: input, shape index: {}]
  %s1 = inlined_call_operand.vmem [shape: f32[2,128], index: 1, kind: input, shape index: {}]
  %s2 = inlined_call_operand.vmem [shape: f32[2,2,128], index: 2, kind: output, shape index: {}]
  %s3 = sld [smem:[#allocation0]]
  $region18: #{_positional_encoding_forward_impl.1} parent=0
    _
  %s5 = ssub.s32 1, %s3
  %s6 = scalar_select 0, %s5, %s3
  // Predicated region
  $region2: #{_positional_encoding_forward_impl.1} parent=0 // pred_check
    _
  $region3: #{_positional_encoding_forward_impl.1} parent=0 // pred_check_branch
    %8 = sbr.rel (0) target = $region5
  $region4: #{_positional_encoding_forward_impl.1} parent=0 // pred_region
    _
  $region5: #{_positional_encoding_forward_impl.1} parent=0 // pred_fallthru
    _
  // Predicated region
  $region6: #{_positional_encoding_forward_impl.1} parent=0 // pred_check
    _
  $region7: #{_positional_encoding_forward_impl.1} parent=0 // pred_check_branch
    %10 = sbr.rel (0) target = $region9
  $region8: #{_positional_encoding_forward_impl.1} parent=0 // pred_region
    _
  $region9: #{_positional_encoding_forward_impl.1} parent=0 // pred_fallthru
    _
  %v11 = vld [vmem:[%s0] sm:$0x3]
  %v12 = vld [vmem:[%s0 + $0x2] sm:$0x3]
  %v13 = vld [vmem:[%s1] sm:$0x3]
  %v14 = vadd.f32 %v11, %v13
  %v15 = vadd.f32 %v12, %v13
  %16 = vst [vmem:[%s2] sm:$0x3] %v14
  %17 = vst [vmem:[%s2 + $0x2] sm:$0x3] %v15
  // Predicated region
  $region10: #{_positional_encoding_forward_impl.1} parent=0 // pred_check
    _
  $region11: #{_positional_encoding_forward_impl.1} parent=0 // pred_check_branch
    %19 = sbr.rel (0) target = $region13
  $region12: #{_positional_encoding_forward_impl.1} parent=0 // pred_region
    _
  $region13: #{_positional_encoding_forward_impl.1} parent=0 // pred_fallthru
    _
  // Predicated region
  $region14: #{_positional_encoding_forward_impl.1} parent=0 // pred_check
    _
  $region15: #{_positional_encoding_forward_impl.1} parent=0 // pred_check_branch
    %21 = sbr.rel (0) target = $region17
  $region16: #{_positional_encoding_forward_impl.1} parent=0 // pred_region
    _
  $region17: #{_positional_encoding_forward_impl.1} parent=0 // pred_fallthru
    _

</llo_original>
